<compile_context>
chip_gen: v5e
topology: v5e:2x2
jax: 0.10.0
libtpu: 0.0.40
codegen_flags: <defaults>
</compile_context>

<pallas_src>
import jax
import jax.numpy as jnp
from jax.experimental import pallas as pl
from jax.experimental.pallas import tpu as pltpu

# ----------------------------- configuration --------------------------------
BATCH = 2
SEQ = 8            # num_tokens (== context_length here)
D_IN = 32
D_OUT = 32
NUM_HEADS = 4
HEAD_DIM = D_OUT // NUM_HEADS
BH = BATCH * NUM_HEADS
DROPOUT = 0.0
# TODO(synk): training-mode dropout on attention weights is not implemented
#             (inference semantics: nn.Dropout is an identity op).

NEG_BIG = -1e9     # plain Python float (literal in-kernel); exp() underflows to 0


# ------------------------------ Pallas kernel --------------------------------
def mha_kernel(xh_ref, wqkv_ref, wo_ref, bo_ref, o_ref):
    # xh_ref  : (BH, SEQ, D_IN)          x replicated per head
    # wqkv_ref: (BH, D_IN, 3*HEAD_DIM)   fused per-(batch,head) QKV weights (q pre-scaled)
    # wo_ref  : (BH, HEAD_DIM, D_OUT)    per-head slice of the out-proj weight
    # bo_ref  : (1, D_OUT)               out-proj bias
    # o_ref   : (BATCH, SEQ, D_OUT)
    xh = xh_ref[...]

    # Fused QKV projection: a single batched MXU stream over n = batch*head.
    qkv = jnp.einsum("nsd,ndf->nsf", xh, wqkv_ref[...],
                     preferred_element_type=jnp.float32)         # (BH, SEQ, 3*HD)
    q = qkv[:, :, :HEAD_DIM]
    k = qkv[:, :, HEAD_DIM:2 * HEAD_DIM]
    v = qkv[:, :, 2 * HEAD_DIM:]

    # Additive causal bias, computed once and shared across all (batch, head).
    row = jax.lax.broadcasted_iota(jnp.int32, (SEQ, SEQ), 0)
    col = jax.lax.broadcasted_iota(jnp.int32, (SEQ, SEQ), 1)
    bias = jnp.where(col > row, NEG_BIG, 0.0)                    # (SEQ, SEQ) f32

    # Scores (1/sqrt(head_dim) already folded into the query weights).
    s = jnp.einsum("nqd,nkd->nqk", q, k,
                   preferred_element_type=jnp.float32)           # (BH, SEQ, SEQ)
    s = s + bias[None, :, :]

    # Numerically-stable softmax along the key axis.
    m = jnp.max(s, axis=-1, keepdims=True)
    p = jnp.exp(s - m)
    l = jnp.sum(p, axis=-1, keepdims=True)
    p = p * pl.reciprocal(l)            # multiply by (exact) reciprocal

    # Attention-weighted values.
    ctx = jnp.einsum("nqk,nkd->nqd", p, v,
                     preferred_element_type=jnp.float32)         # (BH, SEQ, HD)

    # Per-head output projection; summing over heads == concat(heads) @ W_out.
    oh = jnp.einsum("nsd,ndo->nso", ctx, wo_ref[...],
                    preferred_element_type=jnp.float32)          # (BH, SEQ, D_OUT)
    out = jnp.sum(oh.reshape(BATCH, NUM_HEADS, SEQ, D_OUT), axis=1)  # (B, SEQ, D_OUT)
    out = out + bo_ref[...]                                      # (1, D_OUT) broadcast
    o_ref[...] = out.astype(o_ref.dtype)


# -------------------------------- wrapper ------------------------------------
@jax.jit
def multi_head_attention(x, wq, wk, wv, wo, bo):
    b, t, d_in = x.shape
    assert (b, t, d_in) == (BATCH, SEQ, D_IN)

    scale = 1.0 / (HEAD_DIM ** 0.5)   # Python float; folded into W_query below

    def split_heads(w):  # (D_IN, D_OUT) -> (NUM_HEADS, D_IN, HEAD_DIM)
        return w.reshape(d_in, NUM_HEADS, HEAD_DIM).transpose(1, 0, 2)

    # Fuse QKV per head; fold the attention scale into W_query (constant xform).
    wqkv_h = jnp.concatenate(
        [split_heads(wq * scale), split_heads(wk), split_heads(wv)], axis=-1
    )                                                            # (H, D_IN, 3*HD)

    # Replicate along batch so the kernel sees one flat (batch*head) axis.
    # (Pure layout plumbing outside the kernel; a few KiB total.)
    wqkv_bh = jnp.broadcast_to(
        wqkv_h[None], (b, NUM_HEADS, d_in, 3 * HEAD_DIM)
    ).reshape(BH, d_in, 3 * HEAD_DIM)
    wo_bh = jnp.broadcast_to(
        wo.reshape(NUM_HEADS, HEAD_DIM, D_OUT)[None],
        (b, NUM_HEADS, HEAD_DIM, D_OUT),
    ).reshape(BH, HEAD_DIM, D_OUT)
    x_bh = jnp.broadcast_to(
        x[:, None], (b, NUM_HEADS, t, d_in)
    ).reshape(BH, t, d_in)
    bo2d = bo.reshape(1, D_OUT)

    return pl.pallas_call(
        mha_kernel,
        out_shape=jax.ShapeDtypeStruct((b, t, D_OUT), x.dtype),
        grid_spec=pltpu.PrefetchScalarGridSpec(
            num_scalar_prefetch=0,
            grid=(1,),                       # whole batch in a single grid step
            in_specs=[
                pl.BlockSpec((BH, SEQ, D_IN), lambda i: (0, 0, 0)),          # x (per head)
                pl.BlockSpec((BH, D_IN, 3 * HEAD_DIM), lambda i: (0, 0, 0)), # fused QKV W
                pl.BlockSpec((BH, HEAD_DIM, D_OUT), lambda i: (0, 0, 0)),    # out-proj W
                pl.BlockSpec((1, D_OUT), lambda i: (0, 0)),                  # out-proj b
            ],
            out_specs=pl.BlockSpec((BATCH, SEQ, D_OUT), lambda i: (0, 0, 0)),
        ),
        compiler_params=pltpu.CompilerParams(
            dimension_semantics=("arbitrary",),
        ),
    )(x_bh, wqkv_bh, wo_bh, bo2d)


# ------------------------- pure-JAX reference (check) ------------------------
def mha_reference(x, wq, wk, wv, wo, bo):
    b, t, _ = x.shape
    q = x @ wq
    k = x @ wk
    v = x @ wv
    q = q.reshape(b, t, NUM_HEADS, HEAD_DIM).transpose(0, 2, 1, 3)
    k = k.reshape(b, t, NUM_HEADS, HEAD_DIM).transpose(0, 2, 1, 3)
    v = v.reshape(b, t, NUM_HEADS, HEAD_DIM).transpose(0, 2, 1, 3)
    s = jnp.einsum("bhqd,bhkd->bhqk", q, k)
    mask = jnp.triu(jnp.ones((t, t), dtype=bool), k=1)
    s = jnp.where(mask, -jnp.inf, s)
    w = jax.nn.softmax(s / (HEAD_DIM ** 0.5), axis=-1)
    ctx = jnp.einsum("bhqk,bhkd->bhqd", w, v).transpose(0, 2, 1, 3).reshape(b, t, D_OUT)
    return ctx @ wo + bo


# --------------------------------- main ---------------------------------------
if __name__ == "__main__":
    key = jax.random.PRNGKey(0)
    kx, kq, kk, kv, kw, kb = jax.random.split(key, 6)

    x = jax.random.normal(kx, (BATCH, SEQ, D_IN), dtype=jnp.float32)

    # Deterministic parameter init (uniform, roughly like nn.Linear default).
    def init_w(k, shape, fan_in):
        bound = 1.0 / (fan_in ** 0.5)
        return jax.random.uniform(k, shape, jnp.float32, -bound, bound)

    wq = init_w(kq, (D_IN, D_OUT), D_IN)
    wk = init_w(kk, (D_IN, D_OUT), D_IN)
    wv = init_w(kv, (D_IN, D_OUT), D_IN)
    wo = init_w(kw, (D_OUT, D_OUT), D_OUT)
    bo = init_w(kb, (D_OUT,), D_OUT)

    out = multi_head_attention(x, wq, wk, wv, wo, bo)
    out = jax.block_until_ready(out)

    ref = mha_reference(x, wq, wk, wv, wo, bo)
    assert out.shape == (BATCH, SEQ, D_OUT)
    assert jnp.allclose(out, ref, atol=1e-5, rtol=1e-5)

    print("KERNEL_OK")
</pallas_src>

<mosaic_0001>
module attributes {stable_mosaic.version = 11 : i64} {
  func.func @mha_kernel(%arg0: i32, %arg1: memref<8x8x32xf32, #tpu.memory_space<vmem>>, %arg2: memref<8x32x24xf32, #tpu.memory_space<vmem>>, %arg3: memref<8x8x32xf32, #tpu.memory_space<vmem>>, %arg4: memref<1x32xf32, #tpu.memory_space<vmem>>, %arg5: memref<2x8x32xf32, #tpu.memory_space<vmem>>) attributes {dimension_semantics = [#tpu.dimension_semantics<arbitrary>], iteration_bounds = array<i64: 1>, scalar_prefetch = 0 : i64, scratch_operands = 0 : i64, tpu.core_type = #tpu.core_type<tc>, window_params = [{pipeline_mode = #tpu.pipeline_mode<synchronous>, transform_indices = @transform_0, window_bounds = array<i64: 8, 8, 32>}, {pipeline_mode = #tpu.pipeline_mode<synchronous>, transform_indices = @transform_1, window_bounds = array<i64: 8, 32, 24>}, {pipeline_mode = #tpu.pipeline_mode<synchronous>, transform_indices = @transform_2, window_bounds = array<i64: 8, 8, 32>}, {pipeline_mode = #tpu.pipeline_mode<synchronous>, transform_indices = @transform_3, window_bounds = array<i64: 1, 32>}, {pipeline_mode = #tpu.pipeline_mode<synchronous>, transform_indices = @transform_4, window_bounds = array<i64: 2, 8, 32>}]} {
    %c0 = arith.constant 0 : index
    %c0_0 = arith.constant 0 : index
    %c0_1 = arith.constant 0 : index
    %0 = vector.load %arg1[%c0, %c0_0, %c0_1] : memref<8x8x32xf32, #tpu.memory_space<vmem>>, vector<8x8x32xf32>
    %c0_2 = arith.constant 0 : index
    %c0_3 = arith.constant 0 : index
    %c0_4 = arith.constant 0 : index
    %1 = vector.load %arg2[%c0_2, %c0_3, %c0_4] : memref<8x32x24xf32, #tpu.memory_space<vmem>>, vector<8x32x24xf32>
    "tpu.trace_start"() <{level = 10 : i32, message = "nsd,ndf->nsf"}> : () -> ()
    %cst = arith.constant dense<0.000000e+00> : vector<8x8x24xf32>
    %2 = tpu.matmul %0, %1, %cst {dimension_numbers = #tpu.dot_dimension_numbers<[2], [1], [1], [2], [0, 0, 0, 1, 1, 2], [0], [0]>} : vector<8x8x32xf32>, vector<8x32x24xf32>, vector<8x8x24xf32> -> vector<8x8x24xf32>
    "tpu.trace_stop"() : () -> ()
    %3 = vector.extract_strided_slice %2 {offsets = [0, 0, 0], sizes = [8, 8, 8], strides = [1, 1, 1]} : vector<8x8x24xf32> to vector<8x8x8xf32>
    %4 = vector.extract_strided_slice %2 {offsets = [0, 0, 8], sizes = [8, 8, 8], strides = [1, 1, 1]} : vector<8x8x24xf32> to vector<8x8x8xf32>
    %5 = vector.extract_strided_slice %2 {offsets = [0, 0, 16], sizes = [8, 8, 8], strides = [1, 1, 1]} : vector<8x8x24xf32> to vector<8x8x8xf32>
    %6 = tpu.iota {dimensions = array<i32: 0>} : vector<8x8xi32>
    %7 = tpu.iota {dimensions = array<i32: 1>} : vector<8x8xi32>
    %8 = arith.cmpi sgt, %7, %6 : vector<8x8xi32>
    %cst_5 = arith.constant -1.000000e+09 : f32
    %cst_6 = arith.constant 0.000000e+00 : f32
    %9 = vector.broadcast %cst_5 : f32 to vector<8x8xf32>
    %10 = vector.broadcast %cst_6 : f32 to vector<8x8xf32>
    %11 = arith.select %8, %9, %10 : vector<8x8xi1>, vector<8x8xf32>
    "tpu.trace_start"() <{level = 10 : i32, message = "nqd,nkd->nqk"}> : () -> ()
    %cst_7 = arith.constant dense<0.000000e+00> : vector<8x8x8xf32>
    %12 = tpu.matmul %3, %4, %cst_7 {dimension_numbers = #tpu.dot_dimension_numbers<[2], [2], [1], [1], [0, 0, 0, 1, 1, 1], [0], [0]>} : vector<8x8x8xf32>, vector<8x8x8xf32>, vector<8x8x8xf32> -> vector<8x8x8xf32>
    "tpu.trace_stop"() : () -> ()
    %13 = vector.shape_cast %11 : vector<8x8xf32> to vector<1x8x8xf32>
    %14 = vector.broadcast %13 : vector<1x8x8xf32> to vector<8x8x8xf32>
    %15 = arith.addf %12, %14 : vector<8x8x8xf32>
    %cst_8 = arith.constant dense<0xFF800000> : vector<8x8xf32>
    %16 = vector.multi_reduction <maximumf>, %15, %cst_8 [2] : vector<8x8x8xf32> to vector<8x8xf32>
    %17 = vector.shape_cast %16 : vector<8x8xf32> to vector<8x8x1xf32>
    %18 = vector.broadcast %17 : vector<8x8x1xf32> to vector<8x8x8xf32>
    %19 = arith.subf %15, %18 : vector<8x8x8xf32>
    %20 = math.exp %19 : vector<8x8x8xf32>
    %cst_9 = arith.constant dense<0.000000e+00> : vector<8x8xf32>
    %21 = vector.multi_reduction <add>, %20, %cst_9 [2] : vector<8x8x8xf32> to vector<8x8xf32>
    %22 = vector.shape_cast %21 : vector<8x8xf32> to vector<8x8x1xf32>
    %23 = tpu.reciprocal %22 : vector<8x8x1xf32> -> vector<8x8x1xf32>
    %24 = vector.broadcast %23 : vector<8x8x1xf32> to vector<8x8x8xf32>
    %25 = arith.mulf %20, %24 : vector<8x8x8xf32>
    "tpu.trace_start"() <{level = 10 : i32, message = "nqk,nkd->nqd"}> : () -> ()
    %cst_10 = arith.constant dense<0.000000e+00> : vector<8x8x8xf32>
    %26 = tpu.matmul %25, %5, %cst_10 {dimension_numbers = #tpu.dot_dimension_numbers<[2], [1], [1], [2], [0, 0, 0, 1, 1, 2], [0], [0]>} : vector<8x8x8xf32>, vector<8x8x8xf32>, vector<8x8x8xf32> -> vector<8x8x8xf32>
    "tpu.trace_stop"() : () -> ()
    %c0_11 = arith.constant 0 : index
    %c0_12 = arith.constant 0 : index
    %c0_13 = arith.constant 0 : index
    %27 = vector.load %arg3[%c0_11, %c0_12, %c0_13] : memref<8x8x32xf32, #tpu.memory_space<vmem>>, vector<8x8x32xf32>
    "tpu.trace_start"() <{level = 10 : i32, message = "nsd,ndo->nso"}> : () -> ()
    %cst_14 = arith.constant dense<0.000000e+00> : vector<8x8x32xf32>
    %28 = tpu.matmul %26, %27, %cst_14 {dimension_numbers = #tpu.dot_dimension_numbers<[2], [1], [1], [2], [0, 0, 0, 1, 1, 2], [0], [0]>} : vector<8x8x8xf32>, vector<8x8x32xf32>, vector<8x8x32xf32> -> vector<8x8x32xf32>
    "tpu.trace_stop"() : () -> ()
    %29 = vector.shape_cast %28 : vector<8x8x32xf32> to vector<2x4x8x32xf32>
    %cst_15 = arith.constant dense<0.000000e+00> : vector<2x8x32xf32>
    %30 = vector.multi_reduction <add>, %29, %cst_15 [1] : vector<2x4x8x32xf32> to vector<2x8x32xf32>
    %c0_16 = arith.constant 0 : index
    %c0_17 = arith.constant 0 : index
    %31 = vector.load %arg4[%c0_16, %c0_17] : memref<1x32xf32, #tpu.memory_space<vmem>>, vector<1x32xf32>
    %32 = vector.shape_cast %31 : vector<1x32xf32> to vector<1x1x32xf32>
    %33 = vector.broadcast %32 : vector<1x1x32xf32> to vector<2x8x32xf32>
    %34 = arith.addf %30, %33 : vector<2x8x32xf32>
    %c0_18 = arith.constant 0 : index
    %c0_19 = arith.constant 0 : index
    %c0_20 = arith.constant 0 : index
    %35 = vector.load %arg5[%c0_18, %c0_19, %c0_20] : memref<2x8x32xf32, #tpu.memory_space<vmem>>, vector<2x8x32xf32>
    tpu.vector_store %arg5[%c0_18, %c0_19, %c0_20], %34 {strides = array<i32>} : memref<2x8x32xf32, #tpu.memory_space<vmem>>, vector<2x8x32xf32>,
    return
  }
  func.func @transform_0(%arg0: i32) -> (i32, i32, i32) {
    %c0_i32 = arith.constant 0 : i32
    %c0_i32_0 = arith.constant 0 : i32
    %c0_i32_1 = arith.constant 0 : i32
    %c0_i32_2 = arith.constant 0 : i32
    return %c0_i32, %c0_i32_0, %c0_i32_1 : i32, i32, i32
  }
  func.func @transform_1(%arg0: i32) -> (i32, i32, i32) {
    %c0_i32 = arith.constant 0 : i32
    %c0_i32_0 = arith.constant 0 : i32
    %c0_i32_1 = arith.constant 0 : i32
    %c0_i32_2 = arith.constant 0 : i32
    return %c0_i32, %c0_i32_0, %c0_i32_1 : i32, i32, i32
  }
  func.func @transform_2(%arg0: i32) -> (i32, i32, i32) {
    %c0_i32 = arith.constant 0 : i32
    %c0_i32_0 = arith.constant 0 : i32
    %c0_i32_1 = arith.constant 0 : i32
    %c0_i32_2 = arith.constant 0 : i32
    return %c0_i32, %c0_i32_0, %c0_i32_1 : i32, i32, i32
  }
  func.func @transform_3(%arg0: i32) -> (i32, i32) {
    %c0_i32 = arith.constant 0 : i32
    %c0_i32_0 = arith.constant 0 : i32
    %c0_i32_1 = arith.constant 0 : i32
    return %c0_i32, %c0_i32_0 : i32, i32
  }
  func.func @transform_4(%arg0: i32) -> (i32, i32, i32) {
    %c0_i32 = arith.constant 0 : i32
    %c0_i32_0 = arith.constant 0 : i32
    %c0_i32_1 = arith.constant 0 : i32
    %c0_i32_2 = arith.constant 0 : i32
    return %c0_i32, %c0_i32_0, %c0_i32_1 : i32, i32, i32
  }
}

</mosaic_0001>

<llo_original>
// kernel: multi_head_attention.1
$region0: #{multi_head_attention.1}
  #allocation0 [shape = 'u32[]', space=smem, size = 0x4, offset = 0x4, fixed_abs, tag = 'smem constant byte address 0x4 - core index']
  #allocation1 [shape = 'u32[72,128]{1,0:T(1,128)}', space=vmem, size = 0x9000, scoped, tag = 'internal scratch']
  %s0 = inlined_call_operand.vmem [shape: f32[8,8,32], index: 0, kind: input, shape index: {}]
  %s1 = inlined_call_operand.vmem [shape: f32[8,32,24], index: 1, kind: input, shape index: {}]
  %s2 = inlined_call_operand.vmem [shape: f32[8,8,32], index: 2, kind: input, shape index: {}]
  %s3 = inlined_call_operand.vmem [shape: f32[1,32], index: 3, kind: input, shape index: {}]
  %s4 = inlined_call_operand.hbm [shape: f32[2,8,32], index: 4, kind: output, shape index: {}]
  %s5 = sld [smem:[#allocation0]]
  $region26: #{multi_head_attention.1} parent=0
    _
  %s7 = ssub.s32 1, %s5
  %s8 = scalar_select 0, %s7, %s5
  $region1: #{multi_head_attention.1} parent=0
    #allocation2 [shape = 'u8[8192]{0}', space=vmem, size = 0x2000, scoped, tag = 'output window, operand 0, single buffered']
    #allocation3 [shape = 's32[1]{0}', space=sflag, size = 0x4, scoped, tag = 'scoped memory for multi_head_attention.1']
    %9 = vsyncpa [#allocation3], 0
    // Predicated region
    $region2: #{multi_head_attention.1} parent=1 // pred_check
      _
    $region3: #{multi_head_attention.1} parent=1 // pred_check_branch
      %11 = sbr.rel (0) target = $region5
    $region4: #{multi_head_attention.1} parent=1 // pred_region
      _
    $region5: #{multi_head_attention.1} parent=1 // pred_fallthru
      _
    // Predicated region
    $region6: #{multi_head_attention.1} parent=1 // pred_check
      _
    $region7: #{multi_head_attention.1} parent=1 // pred_check_branch
      %13 = sbr.rel (0) target = $region9
    $region8: #{multi_head_attention.1} parent=1 // pred_region
      _
    $region9: #{multi_head_attention.1} parent=1 // pred_fallthru
      _
    // Predicated region
    $region10: #{multi_head_attention.1} parent=1 // pred_check
      _
    $region11: #{multi_head_attention.1} parent=1 // pred_check_branch
      %15 = sbr.rel (0) target = $region13
    $region12: #{multi_head_attention.1} parent=1 // pred_region
      _
    $region13: #{multi_head_attention.1} parent=1 // pred_fallthru
      _
    // Predicated region
    $region14: #{multi_head_attention.1} parent=1 // pred_check
      _
    $region15: #{multi_head_attention.1} parent=1 // pred_check_branch
      %17 = sbr.rel (0) target = $region17
    $region16: #{multi_head_attention.1} parent=1 // pred_region
      _
    $region17: #{multi_head_attention.1} parent=1 // pred_fallthru
      _
    %v18 = vld [vmem:[%s0] sm:$0xff]
    %v19 = vld [vmem:[%s0 + $0x8] sm:$0xff]
    %v20 = vld [vmem:[%s0 + $0x10] sm:$0xff]
    %v21 = vld [vmem:[%s0 + $0x18] sm:$0xff]
    %v22 = vld [vmem:[%s0 + $0x20] sm:$0xff]
    %v23 = vld [vmem:[%s0 + $0x28] sm:$0xff]
    %v24 = vld [vmem:[%s0 + $0x30] sm:$0xff]
    %v25 = vld [vmem:[%s0 + $0x38] sm:$0xff]
    %v26 = vld [vmem:[%s1] sm:$0xff]
    %v27 = vld [vmem:[%s1 + $0x8] sm:$0xff]
    %v28 = vld [vmem:[%s1 + $0x10] sm:$0xff]
    %v29 = vld [vmem:[%s1 + $0x18] sm:$0xff]
    %v30 = vld [vmem:[%s1 + $0x20] sm:$0xff]
    %v31 = vld [vmem:[%s1 + $0x28] sm:$0xff]
    %v32 = vld [vmem:[%s1 + $0x30] sm:$0xff]
    %v33 = vld [vmem:[%s1 + $0x38] sm:$0xff]
    %v34 = vld [vmem:[%s1 + $0x40] sm:$0xff]
    %v35 = vld [vmem:[%s1 + $0x48] sm:$0xff]
    %v36 = vld [vmem:[%s1 + $0x50] sm:$0xff]
    %v37 = vld [vmem:[%s1 + $0x58] sm:$0xff]
    %v38 = vld [vmem:[%s1 + $0x60] sm:$0xff]
    %v39 = vld [vmem:[%s1 + $0x68] sm:$0xff]
    %v40 = vld [vmem:[%s1 + $0x70] sm:$0xff]
    %v41 = vld [vmem:[%s1 + $0x78] sm:$0xff]
    %v42 = vld [vmem:[%s1 + $0x80] sm:$0xff]
    %v43 = vld [vmem:[%s1 + $0x88] sm:$0xff]
    %v44 = vld [vmem:[%s1 + $0x90] sm:$0xff]
    %v45 = vld [vmem:[%s1 + $0x98] sm:$0xff]
    %v46 = vld [vmem:[%s1 + $0xa0] sm:$0xff]
    %v47 = vld [vmem:[%s1 + $0xa8] sm:$0xff]
    %v48 = vld [vmem:[%s1 + $0xb0] sm:$0xff]
    %v49 = vld [vmem:[%s1 + $0xb8] sm:$0xff]
    %v50 = vld [vmem:[%s1 + $0xc0] sm:$0xff]
    %v51 = vld [vmem:[%s1 + $0xc8] sm:$0xff]
    %v52 = vld [vmem:[%s1 + $0xd0] sm:$0xff]
    %v53 = vld [vmem:[%s1 + $0xd8] sm:$0xff]
    %v54 = vld [vmem:[%s1 + $0xe0] sm:$0xff]
    %v55 = vld [vmem:[%s1 + $0xe8] sm:$0xff]
    %v56 = vld [vmem:[%s1 + $0xf0] sm:$0xff]
    %v57 = vld [vmem:[%s1 + $0xf8] sm:$0xff]
    %vm58 = vcmask 261120
    %v60 = vsel %vm58, %v18, 0
    %62 = vmatpush.msra.mxu0 0.0
    %63 = vmatpush.msra.mxu0 0.0
    %64 = vmatpush.msra.mxu0 0.0
    %65 = vmatpush.msra.mxu0 0.0
    %66 = vmatpush.msra.mxu0 0.0
    %67 = vmatpush.msra.mxu0 0.0
    %68 = vmatpush.msra.mxu0 0.0
    %69 = vmatpush.msra.mxu0 0.0
    %70 = vmatpush.msra.mxu0 0.0
    %71 = vmatpush.msra.mxu0 0.0
    %72 = vmatpush.msra.mxu0 0.0
    %73 = vmatpush.msra.mxu0 0.0
    %74 = vmatpush.msra.mxu0 %v29
    %75 = vmatpush.msra.mxu0 %v28
    %76 = vmatpush.msra.mxu0 %v27
    %77 = vmatpush.msra.mxu0 %v26
    %78 = vmatmul.f32.gmra.mxu0 %v60
    %v79 = vpop.f32.mrf.mxu0
    %v80 = vadd.f32 0.0, %v79
    %81 = vdwg.mxu0
    %v83 = vsel %vm58, %v19, 0
    %85 = vmatpush.msra.mxu0 0.0
    %86 = vmatpush.msra.mxu0 0.0
    %87 = vmatpush.msra.mxu0 0.0
    %88 = vmatpush.msra.mxu0 0.0
    %89 = vmatpush.msra.mxu0 0.0
    %90 = vmatpush.msra.mxu0 0.0
    %91 = vmatpush.msra.mxu0 0.0
    %92 = vmatpush.msra.mxu0 0.0
    %93 = vmatpush.msra.mxu0 0.0
    %94 = vmatpush.msra.mxu0 0.0
    %95 = vmatpush.msra.mxu0 0.0
    %96 = vmatpush.msra.mxu0 0.0
    %97 = vmatpush.msra.mxu0 %v33
    %98 = vmatpush.msra.mxu0 %v32
    %99 = vmatpush.msra.mxu0 %v31
    %100 = vmatpush.msra.mxu0 %v30
    %101 = vmatmul.f32.gmra.mxu0 %v83
    %v102 = vpop.f32.mrf.mxu0
    %v103 = vadd.f32 0.0, %v102
    %104 = vdwg.mxu0
    %v106 = vsel %vm58, %v20, 0
    %108 = vmatpush.msra.mxu0 0.0
    %109 = vmatpush.msra.mxu0 0.0
    %110 = vmatpush.msra.mxu0 0.0
    %111 = vmatpush.msra.mxu0 0.0
    %112 = vmatpush.msra.mxu0 0.0
    %113 = vmatpush.msra.mxu0 0.0
    %114 = vmatpush.msra.mxu0 0.0
    %115 = vmatpush.msra.mxu0 0.0
    %116 = vmatpush.msra.mxu0 0.0
    %117 = vmatpush.msra.mxu0 0.0
    %118 = vmatpush.msra.mxu0 0.0
    %119 = vmatpush.msra.mxu0 0.0
    %120 = vmatpush.msra.mxu0 %v37
    %121 = vmatpush.msra.mxu0 %v36
    %122 = vmatpush.msra.mxu0 %v35
    %123 = vmatpush.msra.mxu0 %v34
    %124 = vmatmul.f32.gmra.mxu0 %v106
    %v125 = vpop.f32.mrf.mxu0
    %v126 = vadd.f32 0.0, %v125
    %127 = vdwg.mxu0
    %v129 = vsel %vm58, %v21, 0
    %131 = vmatpush.msra.mxu0 0.0
    %132 = vmatpush.msra.mxu0 0.0
    %133 = vmatpush.msra.mxu0 0.0
    %134 = vmatpush.msra.mxu0 0.0
    %135 = vmatpush.msra.mxu0 0.0
    %136 = vmatpush.msra.mxu0 0.0
    %137 = vmatpush.msra.mxu0 0.0
    %138 = vmatpush.msra.mxu0 0.0
    %139 = vmatpush.msra.mxu0 0.0
    %140 = vmatpush.msra.mxu0 0.0
    %141 = vmatpush.msra.mxu0 0.0
    %142 = vmatpush.msra.mxu0 0.0
    %143 = vmatpush.msra.mxu0 %v41
    %144 = vmatpush.msra.mxu0 %v40
    %145 = vmatpush.msra.mxu0 %v39
    %146 = vmatpush.msra.mxu0 %v38
    %147 = vmatmul.f32.gmra.mxu0 %v129
    %v148 = vpop.f32.mrf.mxu0
    %v149 = vadd.f32 0.0, %v148
    %150 = vdwg.mxu0
    %v152 = vsel %vm58, %v22, 0
    %154 = vmatpush.msra.mxu0 0.0
    %155 = vmatpush.msra.mxu0 0.0
    %156 = vmatpush.msra.mxu0 0.0
    %157 = vmatpush.msra.mxu0 0.0
    %158 = vmatpush.msra.mxu0 0.0
    %159 = vmatpush.msra.mxu0 0.0
    %160 = vmatpush.msra.mxu0 0.0
    %161 = vmatpush.msra.mxu0 0.0
    %162 = vmatpush.msra.mxu0 0.0
    %163 = vmatpush.msra.mxu0 0.0
    %164 = vmatpush.msra.mxu0 0.0
    %165 = vmatpush.msra.mxu0 0.0
    %166 = vmatpush.msra.mxu0 %v45
    %167 = vmatpush.msra.mxu0 %v44
    %168 = vmatpush.msra.mxu0 %v43
    %169 = vmatpush.msra.mxu0 %v42
    %170 = vmatmul.f32.gmra.mxu0 %v152
    %v171 = vpop.f32.mrf.mxu0
    %v172 = vadd.f32 0.0, %v171
    %173 = vdwg.mxu0
    %v175 = vsel %vm58, %v23, 0
    %177 = vmatpush.msra.mxu0 0.0
    %178 = vmatpush.msra.mxu0 0.0
    %179 = vmatpush.msra.mxu0 0.0
    %180 = vmatpush.msra.mxu0 0.0
    %181 = vmatpush.msra.mxu0 0.0
    %182 = vmatpush.msra.mxu0 0.0
    %183 = vmatpush.msra.mxu0 0.0
    %184 = vmatpush.msra.mxu0 0.0
    %185 = vmatpush.msra.mxu0 0.0
    %186 = vmatpush.msra.mxu0 0.0
    %187 = vmatpush.msra.mxu0 0.0
    %188 = vmatpush.msra.mxu0 0.0
    %189 = vmatpush.msra.mxu0 %v49
    %190 = vmatpush.msra.mxu0 %v48
    %191 = vmatpush.msra.mxu0 %v47
    %192 = vmatpush.msra.mxu0 %v46
    %193 = vmatmul.f32.gmra.mxu0 %v175
    %v194 = vpop.f32.mrf.mxu0
    %v195 = vadd.f32 0.0, %v194
    %196 = vdwg.mxu0
    %v198 = vsel %vm58, %v24, 0
    %200 = vmatpush.msra.mxu0 0.0
    %201 = vmatpush.msra.mxu0 0.0
    %202 = vmatpush.msra.mxu0 0.0
    %203 = vmatpush.msra.mxu0 0.0
    %204 = vmatpush.msra.mxu0 0.0
    %205 = vmatpush.msra.mxu0 0.0
    %206 = vmatpush.msra.mxu0 0.0
    %207 = vmatpush.msra.mxu0 0.0
    %208 = vmatpush.msra.mxu0 0.0
    %209 = vmatpush.msra.mxu0 0.0
    %210 = vmatpush.msra.mxu0 0.0
    %211 = vmatpush.msra.mxu0 0.0
    %212 = vmatpush.msra.mxu0 %v53
    %213 = vmatpush.msra.mxu0 %v52
    %214 = vmatpush.msra.mxu0 %v51
    %215 = vmatpush.msra.mxu0 %v50
    %216 = vmatmul.f32.gmra.mxu0 %v198
    %v217 = vpop.f32.mrf.mxu0
    %v218 = vadd.f32 0.0, %v217
    %219 = vdwg.mxu0
    %v221 = vsel %vm58, %v25, 0
    %223 = vmatpush.msra.mxu0 0.0
    %224 = vmatpush.msra.mxu0 0.0
    %225 = vmatpush.msra.mxu0 0.0
    %226 = vmatpush.msra.mxu0 0.0
    %227 = vmatpush.msra.mxu0 0.0
    %228 = vmatpush.msra.mxu0 0.0
    %229 = vmatpush.msra.mxu0 0.0
    %230 = vmatpush.msra.mxu0 0.0
    %231 = vmatpush.msra.mxu0 0.0
    %232 = vmatpush.msra.mxu0 0.0
    %233 = vmatpush.msra.mxu0 0.0
    %234 = vmatpush.msra.mxu0 0.0
    %235 = vmatpush.msra.mxu0 %v57
    %236 = vmatpush.msra.mxu0 %v56
    %237 = vmatpush.msra.mxu0 %v55
    %238 = vmatpush.msra.mxu0 %v54
    %239 = vmatmul.f32.gmra.mxu0 %v221
    %v240 = vpop.f32.mrf.mxu0
    %v241 = vadd.f32 0.0, %v240
    %242 = vdwg.mxu0
    %v243 = vlaneseq
    %v244 = vshrl.u32 %v243, 7
    %v245 = vlaneseq
    %v246 = vand.u32 %v245, 127
    %vm247 = vcmp.gt.s32.totalorder %v246, %v244
    %v248 = vsel %vm247, -1e+09, 0.0
    %250 = vrot.lane.b32.xlu0 %v80, 120
    %v251 = vpop.permute.xlu0 %250
    %vm252 = vcmask 64512
    %v253 = vsel %vm252, %v80, 0
    %v255 = vsel %vm252, %v251, 0
    %257 = vmatpush.xpose.msra.mxu0 0.0
    %258 = vmatpush.xpose.msra.mxu0 0.0
    %259 = vmatpush.xpose.msra.mxu0 0.0
    %260 = vmatpush.xpose.msra.mxu0 0.0
    %261 = vmatpush.xpose.msra.mxu0 0.0
    %262 = vmatpush.xpose.msra.mxu0 0.0
    %263 = vmatpush.xpose.msra.mxu0 0.0
    %264 = vmatpush.xpose.msra.mxu0 0.0
    %265 = vmatpush.xpose.msra.mxu0 0.0
    %266 = vmatpush.xpose.msra.mxu0 0.0
    %267 = vmatpush.xpose.msra.mxu0 0.0
    %268 = vmatpush.xpose.msra.mxu0 0.0
    %269 = vmatpush.xpose.msra.mxu0 0.0
    %270 = vmatpush.xpose.msra.mxu0 0.0
    %271 = vmatpush.xpose.msra.mxu0 0.0
    %272 = vmatpush.xpose.msra.mxu0 %v255
    %273 = vmatmul.f32.gmra.mxu0 %v253
    %v274 = vpop.f32.mrf.mxu0
    %v275 = vadd.f32 %v248, %v274
    %276 = vdwg.mxu0
    %278 = vrot.lane.b32.xlu0 %v103, 120
    %v279 = vpop.permute.xlu0 %278
    %v280 = vsel %vm252, %v103, 0
    %v282 = vsel %vm252, %v279, 0
    %284 = vmatpush.xpose.msra.mxu0 0.0
    %285 = vmatpush.xpose.msra.mxu0 0.0
    %286 = vmatpush.xpose.msra.mxu0 0.0
    %287 = vmatpush.xpose.msra.mxu0 0.0
    %288 = vmatpush.xpose.msra.mxu0 0.0
    %289 = vmatpush.xpose.msra.mxu0 0.0
    %290 = vmatpush.xpose.msra.mxu0 0.0
    %291 = vmatpush.xpose.msra.mxu0 0.0
    %292 = vmatpush.xpose.msra.mxu0 0.0
    %293 = vmatpush.xpose.msra.mxu0 0.0
    %294 = vmatpush.xpose.msra.mxu0 0.0
    %295 = vmatpush.xpose.msra.mxu0 0.0
    %296 = vmatpush.xpose.msra.mxu0 0.0
    %297 = vmatpush.xpose.msra.mxu0 0.0
    %298 = vmatpush.xpose.msra.mxu0 0.0
    %299 = vmatpush.xpose.msra.mxu0 %v282
    %300 = vmatmul.f32.gmra.mxu0 %v280
    %v301 = vpop.f32.mrf.mxu0
    %v302 = vadd.f32 %v248, %v301
    %303 = vdwg.mxu0
    %305 = vrot.lane.b32.xlu0 %v126, 120
    %v306 = vpop.permute.xlu0 %305
    %v307 = vsel %vm252, %v126, 0
    %v309 = vsel %vm252, %v306, 0
    %311 = vmatpush.xpose.msra.mxu0 0.0
    %312 = vmatpush.xpose.msra.mxu0 0.0
    %313 = vmatpush.xpose.msra.mxu0 0.0
    %314 = vmatpush.xpose.msra.mxu0 0.0
    %315 = vmatpush.xpose.msra.mxu0 0.0
    %316 = vmatpush.xpose.msra.mxu0 0.0
    %317 = vmatpush.xpose.msra.mxu0 0.0
    %318 = vmatpush.xpose.msra.mxu0 0.0
    %319 = vmatpush.xpose.msra.mxu0 0.0
    %320 = vmatpush.xpose.msra.mxu0 0.0
    %321 = vmatpush.xpose.msra.mxu0 0.0
    %322 = vmatpush.xpose.msra.mxu0 0.0
    %323 = vmatpush.xpose.msra.mxu0 0.0
    %324 = vmatpush.xpose.msra.mxu0 0.0
    %325 = vmatpush.xpose.msra.mxu0 0.0
    %326 = vmatpush.xpose.msra.mxu0 %v309
    %327 = vmatmul.f32.gmra.mxu0 %v307
    %v328 = vpop.f32.mrf.mxu0
    %v329 = vadd.f32 %v248, %v328
    %330 = vdwg.mxu0
    %332 = vrot.lane.b32.xlu0 %v149, 120
    %v333 = vpop.permute.xlu0 %332
    %v334 = vsel %vm252, %v149, 0
    %v336 = vsel %vm252, %v333, 0
    %338 = vmatpush.xpose.msra.mxu0 0.0
    %339 = vmatpush.xpose.msra.mxu0 0.0
    %340 = vmatpush.xpose.msra.mxu0 0.0
    %341 = vmatpush.xpose.msra.mxu0 0.0
    %342 = vmatpush.xpose.msra.mxu0 0.0
    %343 = vmatpush.xpose.msra.mxu0 0.0
    %344 = vmatpush.xpose.msra.mxu0 0.0
    %345 = vmatpush.xpose.msra.mxu0 0.0
    %346 = vmatpush.xpose.msra.mxu0 0.0
    %347 = vmatpush.xpose.msra.mxu0 0.0
    %348 = vmatpush.xpose.msra.mxu0 0.0
    %349 = vmatpush.xpose.msra.mxu0 0.0
    %350 = vmatpush.xpose.msra.mxu0 0.0
    %351 = vmatpush.xpose.msra.mxu0 0.0
    %352 = vmatpush.xpose.msra.mxu0 0.0
    %353 = vmatpush.xpose.msra.mxu0 %v336
    %354 = vmatmul.f32.gmra.mxu0 %v334
    %v355 = vpop.f32.mrf.mxu0
    %v356 = vadd.f32 %v248, %v355
    %357 = vdwg.mxu0
    %359 = vrot.lane.b32.xlu0 %v172, 120
    %v360 = vpop.permute.xlu0 %359
    %v361 = vsel %vm252, %v172, 0
    %v363 = vsel %vm252, %v360, 0
    %365 = vmatpush.xpose.msra.mxu0 0.0
    %366 = vmatpush.xpose.msra.mxu0 0.0
    %367 = vmatpush.xpose.msra.mxu0 0.0
    %368 = vmatpush.xpose.msra.mxu0 0.0
    %369 = vmatpush.xpose.msra.mxu0 0.0
    %370 = vmatpush.xpose.msra.mxu0 0.0
    %371 = vmatpush.xpose.msra.mxu0 0.0
    %372 = vmatpush.xpose.msra.mxu0 0.0
    %373 = vmatpush.xpose.msra.mxu0 0.0
    %374 = vmatpush.xpose.msra.mxu0 0.0
    %375 = vmatpush.xpose.msra.mxu0 0.0
    %376 = vmatpush.xpose.msra.mxu0 0.0
    %377 = vmatpush.xpose.msra.mxu0 0.0
    %378 = vmatpush.xpose.msra.mxu0 0.0
    %379 = vmatpush.xpose.msra.mxu0 0.0
    %380 = vmatpush.xpose.msra.mxu0 %v363
    %381 = vmatmul.f32.gmra.mxu0 %v361
    %v382 = vpop.f32.mrf.mxu0
    %v383 = vadd.f32 %v248, %v382
    %384 = vdwg.mxu0
    %386 = vrot.lane.b32.xlu0 %v195, 120
    %v387 = vpop.permute.xlu0 %386
    %v388 = vsel %vm252, %v195, 0
    %v390 = vsel %vm252, %v387, 0
    %392 = vmatpush.xpose.msra.mxu0 0.0
    %393 = vmatpush.xpose.msra.mxu0 0.0
    %394 = vmatpush.xpose.msra.mxu0 0.0
    %395 = vmatpush.xpose.msra.mxu0 0.0
    %396 = vmatpush.xpose.msra.mxu0 0.0
    %397 = vmatpush.xpose.msra.mxu0 0.0
    %398 = vmatpush.xpose.msra.mxu0 0.0
    %399 = vmatpush.xpose.msra.mxu0 0.0
    %400 = vmatpush.xpose.msra.mxu0 0.0
    %401 = vmatpush.xpose.msra.mxu0 0.0
    %402 = vmatpush.xpose.msra.mxu0 0.0
    %403 = vmatpush.xpose.msra.mxu0 0.0
    %404 = vmatpush.xpose.msra.mxu0 0.0
    %405 = vmatpush.xpose.msra.mxu0 0.0
    %406 = vmatpush.xpose.msra.mxu0 0.0
    %407 = vmatpush.xpose.msra.mxu0 %v390
    %408 = vmatmul.f32.gmra.mxu0 %v388
    %v409 = vpop.f32.mrf.mxu0
    %v410 = vadd.f32 %v248, %v409
    %411 = vdwg.mxu0
    %413 = vrot.lane.b32.xlu0 %v218, 120
    %v414 = vpop.permute.xlu0 %413
    %v415 = vsel %vm252, %v218, 0
    %v417 = vsel %vm252, %v414, 0
    %419 = vmatpush.xpose.msra.mxu0 0.0
    %420 = vmatpush.xpose.msra.mxu0 0.0
    %421 = vmatpush.xpose.msra.mxu0 0.0
    %422 = vmatpush.xpose.msra.mxu0 0.0
    %423 = vmatpush.xpose.msra.mxu0 0.0
    %424 = vmatpush.xpose.msra.mxu0 0.0
    %425 = vmatpush.xpose.msra.mxu0 0.0
    %426 = vmatpush.xpose.msra.mxu0 0.0
    %427 = vmatpush.xpose.msra.mxu0 0.0
    %428 = vmatpush.xpose.msra.mxu0 0.0
    %429 = vmatpush.xpose.msra.mxu0 0.0
    %430 = vmatpush.xpose.msra.mxu0 0.0
    %431 = vmatpush.xpose.msra.mxu0 0.0
    %432 = vmatpush.xpose.msra.mxu0 0.0
    %433 = vmatpush.xpose.msra.mxu0 0.0
    %434 = vmatpush.xpose.msra.mxu0 %v417
    %435 = vmatmul.f32.gmra.mxu0 %v415
    %v436 = vpop.f32.mrf.mxu0
    %v437 = vadd.f32 %v248, %v436
    %438 = vdwg.mxu0
    %440 = vrot.lane.b32.xlu0 %v241, 120
    %v441 = vpop.permute.xlu0 %440
    %v442 = vsel %vm252, %v241, 0
    %v444 = vsel %vm252, %v441, 0
    %446 = vmatpush.xpose.msra.mxu0 0.0
    %447 = vmatpush.xpose.msra.mxu0 0.0
    %448 = vmatpush.xpose.msra.mxu0 0.0
    %449 = vmatpush.xpose.msra.mxu0 0.0
    %450 = vmatpush.xpose.msra.mxu0 0.0
    %451 = vmatpush.xpose.msra.mxu0 0.0
    %452 = vmatpush.xpose.msra.mxu0 0.0
    %453 = vmatpush.xpose.msra.mxu0 0.0
    %454 = vmatpush.xpose.msra.mxu0 0.0
    %455 = vmatpush.xpose.msra.mxu0 0.0
    %456 = vmatpush.xpose.msra.mxu0 0.0
    %457 = vmatpush.xpose.msra.mxu0 0.0
    %458 = vmatpush.xpose.msra.mxu0 0.0
    %459 = vmatpush.xpose.msra.mxu0 0.0
    %460 = vmatpush.xpose.msra.mxu0 0.0
    %461 = vmatpush.xpose.msra.mxu0 %v444
    %462 = vmatmul.f32.gmra.mxu0 %v442
    %v463 = vpop.f32.mrf.mxu0
    %v464 = vadd.f32 %v248, %v463
    %465 = vdwg.mxu0
    %v466 = vsel %vm252, %v275, -inf
    %467 = vmax.xlane.f32.xlu0 %v466
    %v468 = vpop.xlane.xlu0 %467
    %v469 = vsel %vm252, %v302, -inf
    %470 = vmax.xlane.f32.xlu0 %v469
    %v471 = vpop.xlane.xlu0 %470
    %v472 = vsel %vm252, %v329, -inf
    %473 = vmax.xlane.f32.xlu0 %v472
    %v474 = vpop.xlane.xlu0 %473
    %v475 = vsel %vm252, %v356, -inf
    %476 = vmax.xlane.f32.xlu0 %v475
    %v477 = vpop.xlane.xlu0 %476
    %v478 = vsel %vm252, %v383, -inf
    %479 = vmax.xlane.f32.xlu0 %v478
    %v480 = vpop.xlane.xlu0 %479
    %v481 = vsel %vm252, %v410, -inf
    %482 = vmax.xlane.f32.xlu0 %v481
    %v483 = vpop.xlane.xlu0 %482
    %v484 = vsel %vm252, %v437, -inf
    %485 = vmax.xlane.f32.xlu0 %v484
    %v486 = vpop.xlane.xlu0 %485
    %v487 = vsel %vm252, %v464, -inf
    %488 = vmax.xlane.f32.xlu0 %v487
    %v489 = vpop.xlane.xlu0 %488
    %v490 = vsub.f32 %v275, %v468
    %v491 = vsub.f32 %v302, %v471
    %v492 = vsub.f32 %v329, %v474
    %v493 = vsub.f32 %v356, %v477
    %v494 = vsub.f32 %v383, %v480
    %v495 = vsub.f32 %v410, %v483
    %v496 = vsub.f32 %v437, %v486
    %v497 = vsub.f32 %v464, %v489
    %v498 = vmul.f32 %v490, 1.442695
    %v499 = vpow.pop %v498
    %v500 = vmul.f32 %v491, 1.442695
    %v501 = vpow.pop %v500
    %v502 = vmul.f32 %v492, 1.442695
    %v503 = vpow.pop %v502
    %v504 = vmul.f32 %v493, 1.442695
    %v505 = vpow.pop %v504
    %v506 = vmul.f32 %v494, 1.442695
    %v507 = vpow.pop %v506
    %v508 = vmul.f32 %v495, 1.442695
    %v509 = vpow.pop %v508
    %v510 = vmul.f32 %v496, 1.442695
    %v511 = vpow.pop %v510
    %v512 = vmul.f32 %v497, 1.442695
    %v513 = vpow.pop %v512
    %v514 = vsel %vm252, %v499, 0.0
    %515 = vadd.xlane.f32.xlu0 %v514
    %v516 = vpop.xlane.xlu0 %515
    %v517 = vsel %vm252, %v501, 0.0
    %518 = vadd.xlane.f32.xlu0 %v517
    %v519 = vpop.xlane.xlu0 %518
    %v520 = vsel %vm252, %v503, 0.0
    %521 = vadd.xlane.f32.xlu0 %v520
    %v522 = vpop.xlane.xlu0 %521
    %v523 = vsel %vm252, %v505, 0.0
    %524 = vadd.xlane.f32.xlu0 %v523
    %v525 = vpop.xlane.xlu0 %524
    %v526 = vsel %vm252, %v507, 0.0
    %527 = vadd.xlane.f32.xlu0 %v526
    %v528 = vpop.xlane.xlu0 %527
    %v529 = vsel %vm252, %v509, 0.0
    %530 = vadd.xlane.f32.xlu0 %v529
    %v531 = vpop.xlane.xlu0 %530
    %v532 = vsel %vm252, %v511, 0.0
    %533 = vadd.xlane.f32.xlu0 %v532
    %v534 = vpop.xlane.xlu0 %533
    %v535 = vsel %vm252, %v513, 0.0
    %536 = vadd.xlane.f32.xlu0 %v535
    %v537 = vpop.xlane.xlu0 %536
    %v538 = vrcp.pop %v516
    %v539 = vmul.f32 %v516, %v538
    %v540 = vsub.f32 1.0, %v539
    %v541 = vmul.f32 %v538, %v540
    %v542 = vadd.f32 %v538, %v541
    %vm543 = vweird.f32 %v516
    %vm544 = vweird.f32 %v538
    %vm545 = vmor %vm543, %vm544
    %v546 = vsel %vm545, %v538, %v542
    %v547 = vand.u32 2147483647, %v516
    %vm548 = vcmp.eq.f32.partialorder %v547, 8.507059e+37
    %v549 = vand.u32 %v516, 2147483648
    %v550 = vor.u32 1.1754944e-38, %v549
    %v551 = vsel %vm548, %v550, %v546
    %v552 = vrcp.pop %v519
    %v553 = vmul.f32 %v519, %v552
    %v554 = vsub.f32 1.0, %v553
    %v555 = vmul.f32 %v552, %v554
    %v556 = vadd.f32 %v552, %v555
    %vm557 = vweird.f32 %v519
    %vm558 = vweird.f32 %v552
    %vm559 = vmor %vm557, %vm558
    %v560 = vsel %vm559, %v552, %v556
    %v561 = vand.u32 2147483647, %v519
    %vm562 = vcmp.eq.f32.partialorder %v561, 8.507059e+37
    %v563 = vand.u32 %v519, 2147483648
    %v564 = vor.u32 1.1754944e-38, %v563
    %v565 = vsel %vm562, %v564, %v560
    %v566 = vrcp.pop %v522
    %v567 = vmul.f32 %v522, %v566
    %v568 = vsub.f32 1.0, %v567
    %v569 = vmul.f32 %v566, %v568
    %v570 = vadd.f32 %v566, %v569
    %vm571 = vweird.f32 %v522
    %vm572 = vweird.f32 %v566
    %vm573 = vmor %vm571, %vm572
    %v574 = vsel %vm573, %v566, %v570
    %v575 = vand.u32 2147483647, %v522
    %vm576 = vcmp.eq.f32.partialorder %v575, 8.507059e+37
    %v577 = vand.u32 %v522, 2147483648
    %v578 = vor.u32 1.1754944e-38, %v577
    %v579 = vsel %vm576, %v578, %v574
    %v580 = vrcp.pop %v525
    %v581 = vmul.f32 %v525, %v580
    %v582 = vsub.f32 1.0, %v581
    %v583 = vmul.f32 %v580, %v582
    %v584 = vadd.f32 %v580, %v583
    %vm585 = vweird.f32 %v525
    %vm586 = vweird.f32 %v580
    %vm587 = vmor %vm585, %vm586
    %v588 = vsel %vm587, %v580, %v584
    %v589 = vand.u32 2147483647, %v525
    %vm590 = vcmp.eq.f32.partialorder %v589, 8.507059e+37
    %v591 = vand.u32 %v525, 2147483648
    %v592 = vor.u32 1.1754944e-38, %v591
    %v593 = vsel %vm590, %v592, %v588
    %v594 = vrcp.pop %v528
    %v595 = vmul.f32 %v528, %v594
    %v596 = vsub.f32 1.0, %v595
    %v597 = vmul.f32 %v594, %v596
    %v598 = vadd.f32 %v594, %v597
    %vm599 = vweird.f32 %v528
    %vm600 = vweird.f32 %v594
    %vm601 = vmor %vm599, %vm600
    %v602 = vsel %vm601, %v594, %v598
    %v603 = vand.u32 2147483647, %v528
    %vm604 = vcmp.eq.f32.partialorder %v603, 8.507059e+37
    %v605 = vand.u32 %v528, 2147483648
    %v606 = vor.u32 1.1754944e-38, %v605
    %v607 = vsel %vm604, %v606, %v602
    %v608 = vrcp.pop %v531
    %v609 = vmul.f32 %v531, %v608
    %v610 = vsub.f32 1.0, %v609
    %v611 = vmul.f32 %v608, %v610
    %v612 = vadd.f32 %v608, %v611
    %vm613 = vweird.f32 %v531
    %vm614 = vweird.f32 %v608
    %vm615 = vmor %vm613, %vm614
    %v616 = vsel %vm615, %v608, %v612
    %v617 = vand.u32 2147483647, %v531
    %vm618 = vcmp.eq.f32.partialorder %v617, 8.507059e+37
    %v619 = vand.u32 %v531, 2147483648
    %v620 = vor.u32 1.1754944e-38, %v619
    %v621 = vsel %vm618, %v620, %v616
    %v622 = vrcp.pop %v534
    %v623 = vmul.f32 %v534, %v622
    %v624 = vsub.f32 1.0, %v623
    %v625 = vmul.f32 %v622, %v624
    %v626 = vadd.f32 %v622, %v625
    %vm627 = vweird.f32 %v534
    %vm628 = vweird.f32 %v622
    %vm629 = vmor %vm627, %vm628
    %v630 = vsel %vm629, %v622, %v626
    %v631 = vand.u32 2147483647, %v534
    %vm632 = vcmp.eq.f32.partialorder %v631, 8.507059e+37
    %v633 = vand.u32 %v534, 2147483648
    %v634 = vor.u32 1.1754944e-38, %v633
    %v635 = vsel %vm632, %v634, %v630
    %v636 = vrcp.pop %v537
    %v637 = vmul.f32 %v537, %v636
    %v638 = vsub.f32 1.0, %v637
    %v639 = vmul.f32 %v636, %v638
    %v640 = vadd.f32 %v636, %v639
    %vm641 = vweird.f32 %v537
    %vm642 = vweird.f32 %v636
    %vm643 = vmor %vm641, %vm642
    %v644 = vsel %vm643, %v636, %v640
    %v645 = vand.u32 2147483647, %v537
    %vm646 = vcmp.eq.f32.partialorder %v645, 8.507059e+37
    %v647 = vand.u32 %v537, 2147483648
    %v648 = vor.u32 1.1754944e-38, %v647
    %v649 = vsel %vm646, %v648, %v644
    %v650 = vmul.f32 %v499, %v551
    %v651 = vmul.f32 %v501, %v565
    %v652 = vmul.f32 %v503, %v579
    %v653 = vmul.f32 %v505, %v593
    %v654 = vmul.f32 %v507, %v607
    %v655 = vmul.f32 %v509, %v621
    %v656 = vmul.f32 %v511, %v635
    %v657 = vmul.f32 %v513, %v649
    %658 = vrot.lane.b32.xlu0 %v80, 112
    %v659 = vpop.permute.xlu0 %658
    %v662 = vsel %vm252, %v650, 0
    %664 = vmatpush.msra.mxu0 0.0
    %665 = vmatpush.msra.mxu0 0.0
    %666 = vmatpush.msra.mxu0 0.0
    %667 = vmatpush.msra.mxu0 0.0
    %668 = vmatpush.msra.mxu0 0.0
    %669 = vmatpush.msra.mxu0 0.0
    %670 = vmatpush.msra.mxu0 0.0
    %671 = vmatpush.msra.mxu0 0.0
    %672 = vmatpush.msra.mxu0 0.0
    %673 = vmatpush.msra.mxu0 0.0
    %674 = vmatpush.msra.mxu0 0.0
    %675 = vmatpush.msra.mxu0 0.0
    %676 = vmatpush.msra.mxu0 0.0
    %677 = vmatpush.msra.mxu0 0.0
    %678 = vmatpush.msra.mxu0 0.0
    %679 = vmatpush.msra.mxu0 %v659
    %680 = vmatmul.f32.gmra.mxu0 %v662
    %v681 = vpop.f32.mrf.mxu0
    %v682 = vadd.f32 0.0, %v681
    %683 = vdwg.mxu0
    %684 = vrot.lane.b32.xlu0 %v103, 112
    %v685 = vpop.permute.xlu0 %684
    %v688 = vsel %vm252, %v651, 0
    %690 = vmatpush.msra.mxu0 0.0
    %691 = vmatpush.msra.mxu0 0.0
    %692 = vmatpush.msra.mxu0 0.0
    %693 = vmatpush.msra.mxu0 0.0
    %694 = vmatpush.msra.mxu0 0.0
    %695 = vmatpush.msra.mxu0 0.0
    %696 = vmatpush.msra.mxu0 0.0
    %697 = vmatpush.msra.mxu0 0.0
    %698 = vmatpush.msra.mxu0 0.0
    %699 = vmatpush.msra.mxu0 0.0
    %700 = vmatpush.msra.mxu0 0.0
    %701 = vmatpush.msra.mxu0 0.0
    %702 = vmatpush.msra.mxu0 0.0
    %703 = vmatpush.msra.mxu0 0.0
    %704 = vmatpush.msra.mxu0 0.0
    %705 = vmatpush.msra.mxu0 %v685
    %706 = vmatmul.f32.gmra.mxu0 %v688
    %v707 = vpop.f32.mrf.mxu0
    %v708 = vadd.f32 0.0, %v707
    %709 = vdwg.mxu0
    %710 = vrot.lane.b32.xlu0 %v126, 112
    %v711 = vpop.permute.xlu0 %710
    %v714 = vsel %vm252, %v652, 0
    %716 = vmatpush.msra.mxu0 0.0
    %717 = vmatpush.msra.mxu0 0.0
    %718 = vmatpush.msra.mxu0 0.0
    %719 = vmatpush.msra.mxu0 0.0
    %720 = vmatpush.msra.mxu0 0.0
    %721 = vmatpush.msra.mxu0 0.0
    %722 = vmatpush.msra.mxu0 0.0
    %723 = vmatpush.msra.mxu0 0.0
    %724 = vmatpush.msra.mxu0 0.0
    %725 = vmatpush.msra.mxu0 0.0
    %726 = vmatpush.msra.mxu0 0.0
    %727 = vmatpush.msra.mxu0 0.0
    %728 = vmatpush.msra.mxu0 0.0
    %729 = vmatpush.msra.mxu0 0.0
    %730 = vmatpush.msra.mxu0 0.0
    %731 = vmatpush.msra.mxu0 %v711
    %732 = vmatmul.f32.gmra.mxu0 %v714
    %v733 = vpop.f32.mrf.mxu0
    %v734 = vadd.f32 0.0, %v733
    %735 = vdwg.mxu0
    %736 = vrot.lane.b32.xlu0 %v149, 112
    %v737 = vpop.permute.xlu0 %736
    %v740 = vsel %vm252, %v653, 0
    %742 = vmatpush.msra.mxu0 0.0
    %743 = vmatpush.msra.mxu0 0.0
    %744 = vmatpush.msra.mxu0 0.0
    %745 = vmatpush.msra.mxu0 0.0
    %746 = vmatpush.msra.mxu0 0.0
    %747 = vmatpush.msra.mxu0 0.0
    %748 = vmatpush.msra.mxu0 0.0
    %749 = vmatpush.msra.mxu0 0.0
    %750 = vmatpush.msra.mxu0 0.0
    %751 = vmatpush.msra.mxu0 0.0
    %752 = vmatpush.msra.mxu0 0.0
    %753 = vmatpush.msra.mxu0 0.0
    %754 = vmatpush.msra.mxu0 0.0
    %755 = vmatpush.msra.mxu0 0.0
    %756 = vmatpush.msra.mxu0 0.0
    %757 = vmatpush.msra.mxu0 %v737
    %758 = vmatmul.f32.gmra.mxu0 %v740
    %v759 = vpop.f32.mrf.mxu0
    %v760 = vadd.f32 0.0, %v759
    %761 = vdwg.mxu0
    %762 = vrot.lane.b32.xlu0 %v172, 112
    %v763 = vpop.permute.xlu0 %762
    %v766 = vsel %vm252, %v654, 0
    %768 = vmatpush.msra.mxu0 0.0
    %769 = vmatpush.msra.mxu0 0.0
    %770 = vmatpush.msra.mxu0 0.0
    %771 = vmatpush.msra.mxu0 0.0
    %772 = vmatpush.msra.mxu0 0.0
    %773 = vmatpush.msra.mxu0 0.0
    %774 = vmatpush.msra.mxu0 0.0
    %775 = vmatpush.msra.mxu0 0.0
    %776 = vmatpush.msra.mxu0 0.0
    %777 = vmatpush.msra.mxu0 0.0
    %778 = vmatpush.msra.mxu0 0.0
    %779 = vmatpush.msra.mxu0 0.0
    %780 = vmatpush.msra.mxu0 0.0
    %781 = vmatpush.msra.mxu0 0.0
    %782 = vmatpush.msra.mxu0 0.0
    %783 = vmatpush.msra.mxu0 %v763
    %784 = vmatmul.f32.gmra.mxu0 %v766
    %v785 = vpop.f32.mrf.mxu0
    %v786 = vadd.f32 0.0, %v785
    %787 = vdwg.mxu0
    %788 = vrot.lane.b32.xlu0 %v195, 112
    %v789 = vpop.permute.xlu0 %788
    %v792 = vsel %vm252, %v655, 0
    %794 = vmatpush.msra.mxu0 0.0
    %795 = vmatpush.msra.mxu0 0.0
    %796 = vmatpush.msra.mxu0 0.0
    %797 = vmatpush.msra.mxu0 0.0
    %798 = vmatpush.msra.mxu0 0.0
    %799 = vmatpush.msra.mxu0 0.0
    %800 = vmatpush.msra.mxu0 0.0
    %801 = vmatpush.msra.mxu0 0.0
    %802 = vmatpush.msra.mxu0 0.0
    %803 = vmatpush.msra.mxu0 0.0
    %804 = vmatpush.msra.mxu0 0.0
    %805 = vmatpush.msra.mxu0 0.0
    %806 = vmatpush.msra.mxu0 0.0
    %807 = vmatpush.msra.mxu0 0.0
    %808 = vmatpush.msra.mxu0 0.0
    %809 = vmatpush.msra.mxu0 %v789
    %810 = vmatmul.f32.gmra.mxu0 %v792
    %v811 = vpop.f32.mrf.mxu0
    %v812 = vadd.f32 0.0, %v811
    %813 = vdwg.mxu0
    %814 = vrot.lane.b32.xlu0 %v218, 112
    %v815 = vpop.permute.xlu0 %814
    %v818 = vsel %vm252, %v656, 0
    %820 = vmatpush.msra.mxu0 0.0
    %821 = vmatpush.msra.mxu0 0.0
    %822 = vmatpush.msra.mxu0 0.0
    %823 = vmatpush.msra.mxu0 0.0
    %824 = vmatpush.msra.mxu0 0.0
    %825 = vmatpush.msra.mxu0 0.0
    %826 = vmatpush.msra.mxu0 0.0
    %827 = vmatpush.msra.mxu0 0.0
    %828 = vmatpush.msra.mxu0 0.0
    %829 = vmatpush.msra.mxu0 0.0
    %830 = vmatpush.msra.mxu0 0.0
    %831 = vmatpush.msra.mxu0 0.0
    %832 = vmatpush.msra.mxu0 0.0
    %833 = vmatpush.msra.mxu0 0.0
    %834 = vmatpush.msra.mxu0 0.0
    %835 = vmatpush.msra.mxu0 %v815
    %836 = vmatmul.f32.gmra.mxu0 %v818
    %v837 = vpop.f32.mrf.mxu0
    %v838 = vadd.f32 0.0, %v837
    %839 = vdwg.mxu0
    %840 = vrot.lane.b32.xlu0 %v241, 112
    %v841 = vpop.permute.xlu0 %840
    %v844 = vsel %vm252, %v657, 0
    %846 = vmatpush.msra.mxu0 0.0
    %847 = vmatpush.msra.mxu0 0.0
    %848 = vmatpush.msra.mxu0 0.0
    %849 = vmatpush.msra.mxu0 0.0
    %850 = vmatpush.msra.mxu0 0.0
    %851 = vmatpush.msra.mxu0 0.0
    %852 = vmatpush.msra.mxu0 0.0
    %853 = vmatpush.msra.mxu0 0.0
    %854 = vmatpush.msra.mxu0 0.0
    %855 = vmatpush.msra.mxu0 0.0
    %856 = vmatpush.msra.mxu0 0.0
    %857 = vmatpush.msra.mxu0 0.0
    %858 = vmatpush.msra.mxu0 0.0
    %859 = vmatpush.msra.mxu0 0.0
    %860 = vmatpush.msra.mxu0 0.0
    %861 = vmatpush.msra.mxu0 %v841
    %862 = vmatmul.f32.gmra.mxu0 %v844
    %v863 = vpop.f32.mrf.mxu0
    %v864 = vadd.f32 0.0, %v863
    %865 = vdwg.mxu0
    %v866 = vld [vmem:[%s2] sm:$0xff]
    %v867 = vld [vmem:[%s2 + $0x8] sm:$0xff]
    %v868 = vld [vmem:[%s2 + $0x10] sm:$0xff]
    %v869 = vld [vmem:[%s2 + $0x18] sm:$0xff]
    %v870 = vld [vmem:[%s2 + $0x20] sm:$0xff]
    %v871 = vld [vmem:[%s2 + $0x28] sm:$0xff]
    %v872 = vld [vmem:[%s2 + $0x30] sm:$0xff]
    %v873 = vld [vmem:[%s2 + $0x38] sm:$0xff]
    %v875 = vsel %vm252, %v682, 0
    %877 = vmatpush.msra.mxu0 0.0
    %878 = vmatpush.msra.mxu0 0.0
    %879 = vmatpush.msra.mxu0 0.0
    %880 = vmatpush.msra.mxu0 0.0
    %881 = vmatpush.msra.mxu0 0.0
    %882 = vmatpush.msra.mxu0 0.0
    %883 = vmatpush.msra.mxu0 0.0
    %884 = vmatpush.msra.mxu0 0.0
    %885 = vmatpush.msra.mxu0 0.0
    %886 = vmatpush.msra.mxu0 0.0
    %887 = vmatpush.msra.mxu0 0.0
    %888 = vmatpush.msra.mxu0 0.0
    %889 = vmatpush.msra.mxu0 0.0
    %890 = vmatpush.msra.mxu0 0.0
    %891 = vmatpush.msra.mxu0 0.0
    %892 = vmatpush.msra.mxu0 %v866
    %893 = vmatmul.f32.gmra.mxu0 %v875
    %v894 = vpop.f32.mrf.mxu0
    %v895 = vadd.f32 0.0, %v894
    %896 = vdwg.mxu0
    %v898 = vsel %vm252, %v708, 0
    %900 = vmatpush.msra.mxu0 0.0
    %901 = vmatpush.msra.mxu0 0.0
    %902 = vmatpush.msra.mxu0 0.0
    %903 = vmatpush.msra.mxu0 0.0
    %904 = vmatpush.msra.mxu0 0.0
    %905 = vmatpush.msra.mxu0 0.0
    %906 = vmatpush.msra.mxu0 0.0
    %907 = vmatpush.msra.mxu0 0.0
    %908 = vmatpush.msra.mxu0 0.0
    %909 = vmatpush.msra.mxu0 0.0
    %910 = vmatpush.msra.mxu0 0.0
    %911 = vmatpush.msra.mxu0 0.0
    %912 = vmatpush.msra.mxu0 0.0
    %913 = vmatpush.msra.mxu0 0.0
    %914 = vmatpush.msra.mxu0 0.0
    %915 = vmatpush.msra.mxu0 %v867
    %916 = vmatmul.f32.gmra.mxu0 %v898
    %v917 = vpop.f32.mrf.mxu0
    %v918 = vadd.f32 0.0, %v917
    %919 = vdwg.mxu0
    %v921 = vsel %vm252, %v734, 0
    %923 = vmatpush.msra.mxu0 0.0
    %924 = vmatpush.msra.mxu0 0.0
    %925 = vmatpush.msra.mxu0 0.0
    %926 = vmatpush.msra.mxu0 0.0
    %927 = vmatpush.msra.mxu0 0.0
    %928 = vmatpush.msra.mxu0 0.0
    %929 = vmatpush.msra.mxu0 0.0
    %930 = vmatpush.msra.mxu0 0.0
    %931 = vmatpush.msra.mxu0 0.0
    %932 = vmatpush.msra.mxu0 0.0
    %933 = vmatpush.msra.mxu0 0.0
    %934 = vmatpush.msra.mxu0 0.0
    %935 = vmatpush.msra.mxu0 0.0
    %936 = vmatpush.msra.mxu0 0.0
    %937 = vmatpush.msra.mxu0 0.0
    %938 = vmatpush.msra.mxu0 %v868
    %939 = vmatmul.f32.gmra.mxu0 %v921
    %v940 = vpop.f32.mrf.mxu0
    %v941 = vadd.f32 0.0, %v940
    %942 = vdwg.mxu0
    %v944 = vsel %vm252, %v760, 0
    %946 = vmatpush.msra.mxu0 0.0
    %947 = vmatpush.msra.mxu0 0.0
    %948 = vmatpush.msra.mxu0 0.0
    %949 = vmatpush.msra.mxu0 0.0
    %950 = vmatpush.msra.mxu0 0.0
    %951 = vmatpush.msra.mxu0 0.0
    %952 = vmatpush.msra.mxu0 0.0
    %953 = vmatpush.msra.mxu0 0.0
    %954 = vmatpush.msra.mxu0 0.0
    %955 = vmatpush.msra.mxu0 0.0
    %956 = vmatpush.msra.mxu0 0.0
    %957 = vmatpush.msra.mxu0 0.0
    %958 = vmatpush.msra.mxu0 0.0
    %959 = vmatpush.msra.mxu0 0.0
    %960 = vmatpush.msra.mxu0 0.0
    %961 = vmatpush.msra.mxu0 %v869
    %962 = vmatmul.f32.gmra.mxu0 %v944
    %v963 = vpop.f32.mrf.mxu0
    %v964 = vadd.f32 0.0, %v963
    %965 = vdwg.mxu0
    %v967 = vsel %vm252, %v786, 0
    %969 = vmatpush.msra.mxu0 0.0
    %970 = vmatpush.msra.mxu0 0.0
    %971 = vmatpush.msra.mxu0 0.0
    %972 = vmatpush.msra.mxu0 0.0
    %973 = vmatpush.msra.mxu0 0.0
    %974 = vmatpush.msra.mxu0 0.0
    %975 = vmatpush.msra.mxu0 0.0
    %976 = vmatpush.msra.mxu0 0.0
    %977 = vmatpush.msra.mxu0 0.0
    %978 = vmatpush.msra.mxu0 0.0
    %979 = vmatpush.msra.mxu0 0.0
    %980 = vmatpush.msra.mxu0 0.0
    %981 = vmatpush.msra.mxu0 0.0
    %982 = vmatpush.msra.mxu0 0.0
    %983 = vmatpush.msra.mxu0 0.0
    %984 = vmatpush.msra.mxu0 %v870
    %985 = vmatmul.f32.gmra.mxu0 %v967
    %v986 = vpop.f32.mrf.mxu0
    %v987 = vadd.f32 0.0, %v986
    %988 = vdwg.mxu0
    %v990 = vsel %vm252, %v812, 0
    %992 = vmatpush.msra.mxu0 0.0
    %993 = vmatpush.msra.mxu0 0.0
    %994 = vmatpush.msra.mxu0 0.0
    %995 = vmatpush.msra.mxu0 0.0
    %996 = vmatpush.msra.mxu0 0.0
    %997 = vmatpush.msra.mxu0 0.0
    %998 = vmatpush.msra.mxu0 0.0
    %999 = vmatpush.msra.mxu0 0.0
    %1000 = vmatpush.msra.mxu0 0.0
    %1001 = vmatpush.msra.mxu0 0.0
    %1002 = vmatpush.msra.mxu0 0.0
    %1003 = vmatpush.msra.mxu0 0.0
    %1004 = vmatpush.msra.mxu0 0.0
    %1005 = vmatpush.msra.mxu0 0.0
    %1006 = vmatpush.msra.mxu0 0.0
    %1007 = vmatpush.msra.mxu0 %v871
    %1008 = vmatmul.f32.gmra.mxu0 %v990
    %v1009 = vpop.f32.mrf.mxu0
    %v1010 = vadd.f32 0.0, %v1009
    %1011 = vdwg.mxu0
    %v1013 = vsel %vm252, %v838, 0
    %1015 = vmatpush.msra.mxu0 0.0
    %1016 = vmatpush.msra.mxu0 0.0
    %1017 = vmatpush.msra.mxu0 0.0
    %1018 = vmatpush.msra.mxu0 0.0
    %1019 = vmatpush.msra.mxu0 0.0
    %1020 = vmatpush.msra.mxu0 0.0
    %1021 = vmatpush.msra.mxu0 0.0
    %1022 = vmatpush.msra.mxu0 0.0
    %1023 = vmatpush.msra.mxu0 0.0
    %1024 = vmatpush.msra.mxu0 0.0
    %1025 = vmatpush.msra.mxu0 0.0
    %1026 = vmatpush.msra.mxu0 0.0
    %1027 = vmatpush.msra.mxu0 0.0
    %1028 = vmatpush.msra.mxu0 0.0
    %1029 = vmatpush.msra.mxu0 0.0
    %1030 = vmatpush.msra.mxu0 %v872
    %1031 = vmatmul.f32.gmra.mxu0 %v1013
    %v1032 = vpop.f32.mrf.mxu0
    %v1033 = vadd.f32 0.0, %v1032
    %1034 = vdwg.mxu0
    %v1036 = vsel %vm252, %v864, 0
    %1038 = vmatpush.msra.mxu0 0.0
    %1039 = vmatpush.msra.mxu0 0.0
    %1040 = vmatpush.msra.mxu0 0.0
    %1041 = vmatpush.msra.mxu0 0.0
    %1042 = vmatpush.msra.mxu0 0.0
    %1043 = vmatpush.msra.mxu0 0.0
    %1044 = vmatpush.msra.mxu0 0.0
    %1045 = vmatpush.msra.mxu0 0.0
    %1046 = vmatpush.msra.mxu0 0.0
    %1047 = vmatpush.msra.mxu0 0.0
    %1048 = vmatpush.msra.mxu0 0.0
    %1049 = vmatpush.msra.mxu0 0.0
    %1050 = vmatpush.msra.mxu0 0.0
    %1051 = vmatpush.msra.mxu0 0.0
    %1052 = vmatpush.msra.mxu0 0.0
    %1053 = vmatpush.msra.mxu0 %v873
    %1054 = vmatmul.f32.gmra.mxu0 %v1036
    %v1055 = vpop.f32.mrf.mxu0
    %v1056 = vadd.f32 0.0, %v1055
    %1057 = vdwg.mxu0
    %v1058 = vsel %vm58, %v895, 0.0
    %v1059 = vsel %vm58, %v918, 0.0
    %v1060 = vadd.f32 %v1058, %v1059
    %v1061 = vsel %vm58, %v941, 0.0
    %v1062 = vadd.f32 %v1060, %v1061
    %v1063 = vsel %vm58, %v964, 0.0
    %v1064 = vadd.f32 %v1062, %v1063
    %v1065 = vsel %vm58, %v987, 0.0
    %v1066 = vsel %vm58, %v1010, 0.0
    %v1067 = vadd.f32 %v1065, %v1066
    %v1068 = vsel %vm58, %v1033, 0.0
    %v1069 = vadd.f32 %v1067, %v1068
    %v1070 = vsel %vm58, %v1056, 0.0
    %v1071 = vadd.f32 %v1069, %v1070
    %v1072 = vld [vmem:[%s3] sm:$0x1]
    %v1074 = vperm.slane %v1072, 0
    %v1076 = vadd.f32 %v1064, %v1074
    %v1077 = vadd.f32 %v1071, %v1074
    %1078 = vst.msk [vmem:[#allocation2] sm:$0xff] %vm58, %v1076
    %1079 = vst.msk [vmem:[#allocation2 + $0x8] sm:$0xff] %vm58, %v1077
    // Predicated region
    $region18: #{multi_head_attention.1} parent=1 // pred_check
      _
    $region19: #{multi_head_attention.1} parent=1 // pred_check_branch
      %1081 = sbr.rel (0) target = $region21
    $region20: #{multi_head_attention.1} parent=1 // pred_region
      %1083 = vsyncadd [#allocation3], 0
      %s1084 = sshll.u32 [#allocation2], 4
      %s1085 = int_to_ptr.vmem [resolvable:$true] %s1084
      %s1086 = sshll.u32 %s4, 4
      %s1087 = int_to_ptr.hbm [resolvable:$true] %s1086
      %1092 = dma.vmem_to_hbm [thread:$0]  %s1085, 256, %s1087, [#allocation3], 128, 128, 8
    $region21: #{multi_head_attention.1} parent=1 // pred_fallthru
      _
    // Predicated region
    $region22: #{multi_head_attention.1} parent=1 // pred_check
      _
    $region23: #{multi_head_attention.1} parent=1 // pred_check_branch
      %1094 = sbr.rel (0) target = $region25
    $region24: #{multi_head_attention.1} parent=1 // pred_region
      %1096 = dma.done [#allocation3], 256
    $region25: #{multi_head_attention.1} parent=1 // pred_fallthru
      _
    %1097 = vsyncpa [#allocation3], 1

</llo_original>
